<compile_context>
chip_gen: v5e
topology: v5e:2x2
jax: 0.10.0
libtpu: 0.0.40
codegen_flags: <defaults>
</compile_context>

<pallas_src>
import jax
import jax.numpy as jnp
from jax.experimental import pallas as pl
from jax.experimental.pallas import tpu as pltpu

EPS = 1e-8  # torch.nn.functional.cosine_similarity default eps


def _make_clip_image_loss_kernel(tile_n: int, n_images: int):
    """Per-tile kernel: project a tile of image features, reduce 1 - cos."""

    def kernel(tsq_ref, img_ref, wv_ref, temb_ref, out_ref):
        # tsq_ref : (1,)         f32  SMEM  ||text_emb||^2 (hoisted)
        # img_ref : (tile_n, H)  f32/bf16   image pooled features (streamed)
        # wv_ref  : (H, E)       bf16       visual_projection weight (resident)
        # temb_ref: (1, E)       f32        text embedding (resident)
        # out_ref : (1, 8, 128)  f32        per-tile partial loss
        i = pl.program_id(0)

        # Visual projection on the MXU: bf16 inputs, f32 accumulate.  The
        # bf16 cast is a VPU op hidden under the MXU-bound matmul.
        img = img_ref[...].astype(jnp.bfloat16)
        img_emb = jnp.dot(img, wv_ref[...],
                          preferred_element_type=jnp.float32)       # (tile_n, E)

        temb = temb_ref[...]                                         # (1, E)
        t_sq = tsq_ref[0]                                            # scalar
        dots = jnp.sum(img_emb * temb, axis=-1, keepdims=True)       # (tile_n, 1)
        i_sq = jnp.sum(img_emb * img_emb, axis=-1, keepdims=True)    # (tile_n, 1)

        # torch cosine_similarity clamps the product of the norms:
        #   cos = dot / max(||t|| * ||i||, eps)
        #       = dot * rsqrt(max(t_sq * i_sq, eps^2))          (EUP rsqrt)
        inv = jax.lax.rsqrt(jnp.maximum(t_sq * i_sq, EPS * EPS))
        cos = dots * inv                                             # (tile_n, 1)

        # Mask rows of the (possibly partial / out-of-bounds) last tile.
        # Select, not arithmetic -> garbage rows cannot poison the sum.
        row_ids = (i * tile_n
                   + jax.lax.broadcasted_iota(jnp.int32, (tile_n, 1), 0))
        per_row = jnp.where(row_ids < n_images, 1.0 - cos, 0.0)      # (tile_n, 1)

        partial = jnp.sum(per_row)
        out_ref[...] = jnp.full(out_ref.shape, partial, dtype=out_ref.dtype)

    return kernel


def clip_text_images_loss(text_feat, image_feats, w_text, w_visual, *,
                          tile_n: int = 512):
    """total_loss = sum_i (1 - cos_sim(text_feat @ Wt, image_feats[i] @ Wv)).

    text_feat   : (1, H)   pooled text features (same text for every image)
    image_feats : (N, H)   pooled image features, one row per image (pass bf16
                           to also skip the in-kernel cast's extra vld traffic)
    w_text      : (H, E)   text_projection weight
    w_visual    : (H, E)   visual_projection weight
    """
    assert text_feat.shape[0] == 1, "module semantics: a single text string"
    n, h = image_feats.shape
    e = w_visual.shape[1]

    # Hoisted text projection (M=1 matmul would waste the MXU and be re-issued
    # every grid step) and ||t||^2 (pure per-step filler inside the kernel).
    text_emb = (text_feat.astype(jnp.float32)
                @ w_text.astype(jnp.float32))                        # (1, E)
    t_sq = jnp.sum(text_emb * text_emb).reshape(1)                   # (1,) f32

    # Resident weight in bf16 (tiny one-off cast, stays VMEM resident).
    wv = w_visual.astype(jnp.bfloat16)

    # Legal block shape: tile_n is a multiple of 8, or equals the full N dim.
    if n <= tile_n:
        tile_n = n
    else:
        tile_n = max(8, (tile_n // 8) * 8)
    num_tiles = pl.cdiv(n, tile_n)

    kernel = _make_clip_image_loss_kernel(tile_n, n)

    cost = pl.CostEstimate(
        flops=2 * n * h * e + 4 * n * e,
        transcendentals=n,
        bytes_accessed=(n * h * image_feats.dtype.itemsize
                        + h * e * 2 + e * 4 + 4
                        + num_tiles * 8 * 128 * 4),
    )

    partials = pl.pallas_call(
        kernel,
        out_shape=jax.ShapeDtypeStruct((num_tiles, 8, 128), jnp.float32),
        grid_spec=pltpu.PrefetchScalarGridSpec(
            num_scalar_prefetch=0,
            grid=(num_tiles,),
            in_specs=[
                # ||text_emb||^2: scalar in SMEM.
                pl.BlockSpec(memory_space=pltpu.MemorySpace.SMEM),
                # Image tile: streamed / double-buffered over the grid,
                # directly from the caller's array (no pad/copy pass).
                pl.BlockSpec((tile_n, h), lambda i: (i, 0)),
                # Weight + text embedding: constant index_map -> fetched once,
                # single-buffered (no wasted second VMEM buffer).
                pl.BlockSpec((h, e), lambda i: (0, 0),
                             pipeline_mode=pl.Buffered(1)),
                pl.BlockSpec((1, e), lambda i: (0, 0),
                             pipeline_mode=pl.Buffered(1)),
            ],
            out_specs=pl.BlockSpec((1, 8, 128), lambda i: (i, 0, 0)),
        ),
        compiler_params=pltpu.CompilerParams(
            # Independent per-tile partials -> safe to shard across
            # TensorCores on v7x; no-op on single-TC v5e/v6e.
            dimension_semantics=("parallel",),
            # Explicit scoped-VMEM budget: safe on v5e (16 MiB default) and
            # well under v7x's 64 MiB physical VMEM even at tile_n=1024.
            vmem_limit_bytes=32 * 1024 * 1024,
        ),
        cost_estimate=cost,
    )(t_sq, image_feats, wv, text_emb)

    return jnp.sum(partials[:, 0, 0])


def _reference(text_feat, image_feats, w_text, w_visual):
    """Pure-JAX f32 reference of the module's forward."""
    te = text_feat.astype(jnp.float32) @ w_text.astype(jnp.float32)      # (1, E)
    ie = image_feats.astype(jnp.float32) @ w_visual.astype(jnp.float32)  # (N, E)
    tn = jnp.linalg.norm(te, axis=-1)                                    # (1,)
    inn = jnp.linalg.norm(ie, axis=-1)                                   # (N,)
    cos = (ie @ te[0]) / jnp.maximum(tn[0] * inn, EPS)                   # (N,)
    return jnp.sum(1.0 - cos)


if __name__ == "__main__":
    # Small synthetic shapes: 2 images, hidden=32, embed_dim=32 (real CLIP
    # uses H/E in the 512-1024 range, already lane multiples).
    # TODO(synk): the pretrained CLIP text/vision transformer encoders and the
    # image preprocessing are not reproducible here; their pooled outputs are
    # modeled as random features.
    N_IMAGES, HIDDEN, EMBED = 2, 32, 32

    key = jax.random.PRNGKey(0)
    k1, k2, k3, k4 = jax.random.split(key, 4)
    text_feat = jax.random.normal(k1, (1, HIDDEN), dtype=jnp.float32)
    image_feats = jax.random.normal(k2, (N_IMAGES, HIDDEN), dtype=jnp.float32)
    w_text = jax.random.normal(k3, (HIDDEN, EMBED), dtype=jnp.float32) * 0.02
    w_visual = jax.random.normal(k4, (HIDDEN, EMBED), dtype=jnp.float32) * 0.02

    loss = jax.block_until_ready(
        clip_text_images_loss(text_feat, image_feats, w_text, w_visual)
    )

    # Tight check along the same bf16-quantized matmul path the kernel uses.
    img_q = image_feats.astype(jnp.bfloat16).astype(jnp.float32)
    wv_q = w_visual.astype(jnp.bfloat16).astype(jnp.float32)
    ref_q = _reference(text_feat, img_q, w_text, wv_q)
    assert jnp.allclose(loss, ref_q, atol=2e-3, rtol=2e-3), (loss, ref_q)

    # Loose check against full-f32 module semantics.
    ref = _reference(text_feat, image_feats, w_text, w_visual)
    assert jnp.allclose(loss, ref, atol=3e-2, rtol=3e-2), (loss, ref)

    print("KERNEL_OK")
</pallas_src>

<mosaic_0001>
module attributes {stable_mosaic.version = 11 : i64} {
  func.func @kernel(%arg0: i32, %arg1: memref<1xf32, #tpu.memory_space<smem>>, %arg2: memref<2x32xf32, #tpu.memory_space<vmem>>, %arg3: memref<32x32xbf16, #tpu.memory_space<vmem>>, %arg4: memref<1x32xf32, #tpu.memory_space<vmem>>, %arg5: memref<1x8x128xf32, #tpu.memory_space<vmem>>) attributes {dimension_semantics = [#tpu.dimension_semantics<parallel>], iteration_bounds = array<i64: 1>, scalar_prefetch = 0 : i64, scratch_operands = 0 : i64, tpu.core_type = #tpu.core_type<tc>, window_params = [{transform_indices = @transform_0, window_bounds = array<i64: 1>}, {transform_indices = @transform_1, window_bounds = array<i64: 2, 32>}, {pipeline_mode = #tpu.pipeline_mode<synchronous>, transform_indices = @transform_2, window_bounds = array<i64: 32, 32>}, {pipeline_mode = #tpu.pipeline_mode<synchronous>, transform_indices = @transform_3, window_bounds = array<i64: 1, 32>}, {transform_indices = @transform_4, window_bounds = array<i64: 1, 8, 128>}]} {
    %c0 = arith.constant 0 : index
    %c0_0 = arith.constant 0 : index
    %0 = vector.load %arg2[%c0, %c0_0] : memref<2x32xf32, #tpu.memory_space<vmem>>, vector<2x32xf32>
    %1 = arith.truncf %0 : vector<2x32xf32> to vector<2x32xbf16>
    %c0_1 = arith.constant 0 : index
    %c0_2 = arith.constant 0 : index
    %2 = vector.load %arg3[%c0_1, %c0_2] : memref<32x32xbf16, #tpu.memory_space<vmem>>, vector<32x32xbf16>
    %cst = arith.constant dense<0.000000e+00> : vector<2x32xf32>
    %3 = tpu.matmul %1, %2, %cst {dimension_numbers = #tpu.dot_dimension_numbers<[1], [0], [0], [1], [0, 0, 1, 1], [], []>} : vector<2x32xbf16>, vector<32x32xbf16>, vector<2x32xf32> -> vector<2x32xf32>
    %c0_3 = arith.constant 0 : index
    %c0_4 = arith.constant 0 : index
    %4 = vector.load %arg4[%c0_3, %c0_4] : memref<1x32xf32, #tpu.memory_space<vmem>>, vector<1x32xf32>
    %c0_5 = arith.constant 0 : index
    %5 = memref.load %arg1[%c0_5] : memref<1xf32, #tpu.memory_space<smem>>
    %6 = vector.broadcast %4 : vector<1x32xf32> to vector<2x32xf32>
    %7 = arith.mulf %3, %6 : vector<2x32xf32>
    %cst_6 = arith.constant dense<0.000000e+00> : vector<2xf32>
    %8 = vector.multi_reduction <add>, %7, %cst_6 [1] : vector<2x32xf32> to vector<2xf32>
    %9 = vector.shape_cast %8 : vector<2xf32> to vector<2x1xf32>
    %10 = arith.mulf %3, %3 : vector<2x32xf32>
    %cst_7 = arith.constant dense<0.000000e+00> : vector<2xf32>
    %11 = vector.multi_reduction <add>, %10, %cst_7 [1] : vector<2x32xf32> to vector<2xf32>
    %12 = vector.shape_cast %11 : vector<2xf32> to vector<2x1xf32>
    %13 = vector.broadcast %5 : f32 to vector<2x1xf32>
    %14 = arith.mulf %13, %12 : vector<2x1xf32>
    %cst_8 = arith.constant 1.000000e-16 : f32
    %15 = vector.broadcast %cst_8 : f32 to vector<2x1xf32>
    %16 = arith.maximumf %14, %15 : vector<2x1xf32>
    %17 = math.rsqrt %16 : vector<2x1xf32>
    %18 = arith.mulf %9, %17 : vector<2x1xf32>
    %c2_i32 = arith.constant 2 : i32
    %19 = arith.muli %arg0, %c2_i32 : i32
    %20 = tpu.iota {dimensions = array<i32: 0>} : vector<2x1xi32>
    %21 = vector.broadcast %19 : i32 to vector<2x1xi32>
    %22 = arith.addi %21, %20 : vector<2x1xi32>
    %c2_i32_9 = arith.constant 2 : i32
    %23 = vector.broadcast %c2_i32_9 : i32 to vector<2x1xi32>
    %24 = arith.cmpi slt, %22, %23 : vector<2x1xi32>
    %cst_10 = arith.constant 1.000000e+00 : f32
    %25 = vector.broadcast %cst_10 : f32 to vector<2x1xf32>
    %26 = arith.subf %25, %18 : vector<2x1xf32>
    %cst_11 = arith.constant 0.000000e+00 : f32
    %27 = vector.broadcast %cst_11 : f32 to vector<2x1xf32>
    %28 = arith.select %24, %26, %27 : vector<2x1xi1>, vector<2x1xf32>
    %29 = vector.shape_cast %28 : vector<2x1xf32> to vector<1x2x1xf32>
    %cst_12 = arith.constant dense<0.000000e+00> : vector<1xf32>
    %30 = vector.multi_reduction <add>, %29, %cst_12 [1, 2] : vector<1x2x1xf32> to vector<1xf32>
    %31 = vector.shape_cast %30 : vector<1xf32> to vector<1x1x1xf32>
    %32 = vector.extract %31[0, 0, 0] : f32 from vector<1x1x1xf32>
    %33 = vector.broadcast %32 : f32 to vector<1x8x128xf32>
    %c0_13 = arith.constant 0 : index
    %c0_14 = arith.constant 0 : index
    %c0_15 = arith.constant 0 : index
    %34 = vector.load %arg5[%c0_13, %c0_14, %c0_15] : memref<1x8x128xf32, #tpu.memory_space<vmem>>, vector<1x8x128xf32>
    tpu.vector_store %arg5[%c0_13, %c0_14, %c0_15], %33 {strides = array<i32>} : memref<1x8x128xf32, #tpu.memory_space<vmem>>, vector<1x8x128xf32>,
    return
  }
  func.func @transform_0(%arg0: i32) -> i32 {
    %c0_i32 = arith.constant 0 : i32
    %c0_i32_0 = arith.constant 0 : i32
    return %c0_i32 : i32
  }
  func.func @transform_1(%arg0: i32) -> (i32, i32) {
    %c0_i32 = arith.constant 0 : i32
    %c0_i32_0 = arith.constant 0 : i32
    return %arg0, %c0_i32 : i32, i32
  }
  func.func @transform_2(%arg0: i32) -> (i32, i32) {
    %c0_i32 = arith.constant 0 : i32
    %c0_i32_0 = arith.constant 0 : i32
    %c0_i32_1 = arith.constant 0 : i32
    return %c0_i32, %c0_i32_0 : i32, i32
  }
  func.func @transform_3(%arg0: i32) -> (i32, i32) {
    %c0_i32 = arith.constant 0 : i32
    %c0_i32_0 = arith.constant 0 : i32
    %c0_i32_1 = arith.constant 0 : i32
    return %c0_i32, %c0_i32_0 : i32, i32
  }
  func.func @transform_4(%arg0: i32) -> (i32, i32, i32) {
    %c0_i32 = arith.constant 0 : i32
    %c0_i32_0 = arith.constant 0 : i32
    %c0_i32_1 = arith.constant 0 : i32
    return %arg0, %c0_i32, %c0_i32_0 : i32, i32, i32
  }
}

</mosaic_0001>

<llo_original>
// kernel: tpu_custom_call.1
$region0: #{tpu_custom_call.1}
  #allocation0 [shape = 'u32[]', space=smem, size = 0x4, offset = 0x4, fixed_abs, tag = 'smem constant byte address 0x4 - core index']
  #allocation1 [shape = 'u32[72,128]{1,0:T(1,128)}', space=vmem, size = 0x9000, scoped, tag = 'internal scratch']
  #allocation2 [shape = 'f32[1]{0:T(128)S(6)}', space=smem, size = 0x200, scoped, tag = 'scoped memory for tpu_custom_call.1']
  %s0 = inlined_call_operand.<no memory space> [shape: f32[1], index: 0, kind: input, shape index: {}]
  %s1 = inlined_call_operand.vmem [shape: f32[2,32], index: 1, kind: input, shape index: {}]
  %s2 = inlined_call_operand.hbm [shape: bf16[32,32], index: 2, kind: input, shape index: {}]
  %s3 = inlined_call_operand.vmem [shape: f32[1,32], index: 3, kind: input, shape index: {}]
  %s4 = inlined_call_operand.hbm [shape: f32[1,8,128], index: 4, kind: output, shape index: {}]
  %s5 = sld [smem:[#allocation0]]
  $region30: #{tpu_custom_call.1} parent=0
    _
  %s7 = ssub.s32 1, %s5
  %s8 = scalar_select 0, %s7, %s5
  %9 = sst [smem:[#allocation2]] %s0
  $region1: #{tpu_custom_call.1} parent=0
    #allocation3 [shape = 'u8[8192]{0}', space=vmem, size = 0x2000, scoped, tag = 'input window, operand 2, single buffered']
    #allocation4 [shape = 's32[1]{0}', space=sflag, size = 0x4, scoped, tag = 'scoped memory for tpu_custom_call.1']
    #allocation5 [shape = 's32[1]{0}', space=sflag, size = 0x4, scoped, tag = 'scoped memory for tpu_custom_call.1']
    #allocation6 [shape = 'u8[4096]{0}', space=vmem, size = 0x1000, scoped, tag = 'output window, operand 0, single buffered']
    %10 = vsyncpa [#allocation4], 0
    %11 = vsyncpa [#allocation5], 0
    // Predicated region
    $region2: #{tpu_custom_call.1} parent=1 // pred_check
      _
    $region3: #{tpu_custom_call.1} parent=1 // pred_check_branch
      %13 = sbr.rel (0) target = $region5
    $region4: #{tpu_custom_call.1} parent=1 // pred_region
      _
    $region5: #{tpu_custom_call.1} parent=1 // pred_fallthru
      _
    // Predicated region
    $region6: #{tpu_custom_call.1} parent=1 // pred_check
      _
    $region7: #{tpu_custom_call.1} parent=1 // pred_check_branch
      %15 = sbr.rel (0) target = $region9
    $region8: #{tpu_custom_call.1} parent=1 // pred_region
      _
    $region9: #{tpu_custom_call.1} parent=1 // pred_fallthru
      _
    // Predicated region
    $region10: #{tpu_custom_call.1} parent=1 // pred_check
      _
    $region11: #{tpu_custom_call.1} parent=1 // pred_check_branch
      %17 = sbr.rel (0) target = $region13
    $region12: #{tpu_custom_call.1} parent=1 // pred_region
      %19 = vsyncadd [#allocation4], 0
      %s20 = sshll.u32 %s2, 4
      %s21 = int_to_ptr.hbm [resolvable:$true] %s20
      %s22 = sshll.u32 [#allocation3], 4
      %s23 = int_to_ptr.vmem [resolvable:$true] %s22
      %28 = dma.hbm_to_vmem [thread:$0]  %s21, 256, %s23, [#allocation4], 64, 64, 4
    $region13: #{tpu_custom_call.1} parent=1 // pred_fallthru
      _
    // Predicated region
    $region14: #{tpu_custom_call.1} parent=1 // pred_check
      _
    $region15: #{tpu_custom_call.1} parent=1 // pred_check_branch
      %30 = sbr.rel (0) target = $region17
    $region16: #{tpu_custom_call.1} parent=1 // pred_region
      _
    $region17: #{tpu_custom_call.1} parent=1 // pred_fallthru
      _
    // Predicated region
    $region18: #{tpu_custom_call.1} parent=1 // pred_check
      _
    $region19: #{tpu_custom_call.1} parent=1 // pred_check_branch
      %32 = sbr.rel (0) target = $region21
    $region20: #{tpu_custom_call.1} parent=1 // pred_region
      %34 = dma.done [#allocation4], 256
    $region21: #{tpu_custom_call.1} parent=1 // pred_fallthru
      _
    %v36 = vld [vmem:[%s1] sm:$0x3]
    %v37 = vpack.c.bf16 %v36, %v36
    %v38 = vld [vmem:[#allocation3] sm:$0xf]
    %v39 = vld [vmem:[#allocation3 + $0x4] sm:$0xf]
    %v40 = vld [vmem:[#allocation3 + $0x8] sm:$0xf]
    %v41 = vld [vmem:[#allocation3 + $0xc] sm:$0xf]
    %v46 = vunpack.c.l.b16 %v38
    %v47 = vunpack.c.l.b16 %v39
    %v48 = vunpack.c.l.b16 %v40
    %v49 = vunpack.c.l.b16 %v41
    %v50 = vpack.c.b16 %v47, %v46
    %v51 = vpack.c.b16 %v49, %v48
    %vm54 = vcmask 261120
    %v56 = vsel %vm54, %v37, 0
    %58 = vmatpush.bf16.msra.mxu0 0
    %59 = vmatpush.bf16.msra.mxu0 0
    %60 = vmatpush.bf16.msra.mxu0 0
    %61 = vmatpush.bf16.msra.mxu0 0
    %62 = vmatpush.bf16.msra.mxu0 0
    %63 = vmatpush.bf16.msra.mxu0 0
    %64 = vmatpush.bf16.msra.mxu0 %v51
    %65 = vmatpush.bf16.msra.mxu0 %v50
    %66 = vmatmul.bf16.gmra.mxu0 %v56
    %v67 = vpop.f32.mrf.mxu0
    %v68 = vadd.f32 0.0, %v67
    %v69 = vpop.f32.mrf.mxu0
    %70 = vdwg.mxu0
    %v71 = vld [vmem:[%s3] sm:$0x1]
    %s72 = sld [smem:[#allocation2]]
    %v74 = vperm.slane %v71, 0
    %v76 = vmul.f32 %v68, %v74
    %vm77 = vcmask 254976
    %v78 = vsel %vm77, %v76, 0.0
    %79 = vadd.xlane.f32.xlu0 %v78
    %v80 = vpop.xlane.xlu0 %79
    %v81 = vmul.f32 %v68, %v68
    %v82 = vsel %vm77, %v81, 0.0
    %83 = vadd.xlane.f32.xlu0 %v82
    %v84 = vpop.xlane.xlu0 %83
    %v85 = vstv %s72
    %v86 = vmul.f32 %v85, %v84
    %v87 = vmax.f32 %v86, 1e-16
    %v88 = vrsqrt.pop %v87
    %v89 = vmul.f32 %v88, %v87
    %v90 = vmul.f32 %v89, %v88
    %v91 = vmul.f32 0.5, %v90
    %v92 = vsub.f32 1.5, %v91
    %v93 = vmul.f32 %v88, %v92
    %vm94 = vweird.f32 %v87
    %vm95 = vweird.f32 %v88
    %vm96 = vmor %vm94, %vm95
    %v97 = vsel %vm96, %v88, %v93
    %v98 = vmul.f32 %v80, %v97
    %s99 = smul.u32 0, 2
    %v100 = vlaneseq
    %v101 = vshrl.u32 %v100, 7
    %v102 = vstv %s99
    %v103 = vadd.s32 %v102, %v101
    %vm104 = vcmp.lt.s32.totalorder %v103, 2
    %v105 = vsub.f32 1.0, %v98
    %v106 = vsel %vm104, %v105, 0.0
    %vm107 = vcmask 1024
    %v108 = vsel %vm107, %v106, 0.0
    %109 = vadd.xlane.f32.xlu0 %v108
    %v110 = vpop.xlane.xlu0 %109
    %v111 = vrot.slane %v110, 4
    %v112 = vadd.f32 %v110, %v111
    %v113 = vrot.slane %v112, 2
    %v114 = vadd.f32 %v112, %v113
    %v115 = vrot.slane %v114, 1
    %v116 = vadd.f32 %v114, %v115
    %s117 = vtos %v116
    %v118 = vstv %s117
    %119 = vst [vmem:[#allocation6] sm:$0xff] %v118
    // Predicated region
    $region22: #{tpu_custom_call.1} parent=1 // pred_check
      _
    $region23: #{tpu_custom_call.1} parent=1 // pred_check_branch
      %121 = sbr.rel (0) target = $region25
    $region24: #{tpu_custom_call.1} parent=1 // pred_region
      %123 = vsyncadd [#allocation5], 0
      %s125 = sshll.u32 [#allocation6], 4
      %s126 = int_to_ptr.vmem [resolvable:$true] %s125
      %s127 = sshll.u32 %s4, 4
      %s128 = int_to_ptr.hbm [resolvable:$true] %s127
      %130 = dma.vmem_to_hbm [thread:$0]  %s126, 128, %s128, [#allocation5]
    $region25: #{tpu_custom_call.1} parent=1 // pred_fallthru
      _
    // Predicated region
    $region26: #{tpu_custom_call.1} parent=1 // pred_check
      _
    $region27: #{tpu_custom_call.1} parent=1 // pred_check_branch
      %132 = sbr.rel (0) target = $region29
    $region28: #{tpu_custom_call.1} parent=1 // pred_region
      %134 = dma.done [#allocation5], 128
    $region29: #{tpu_custom_call.1} parent=1 // pred_fallthru
      _
    %135 = vsyncpa [#allocation4], 1
    %136 = vsyncpa [#allocation5], 1

</llo_original>
